<compile_context>
chip_gen: v6e
topology: v6e:2x2x1
jax: 0.10.0
libtpu: 0.0.40
codegen_flags: <defaults>
</compile_context>

<pallas_src>
import functools

import jax
import jax.numpy as jnp
from jax import lax
from jax.experimental import pallas as pl
from jax.experimental.pallas import tpu as pltpu

_LANE = 128      # TPU vreg lane width
_SUBLANE = 8     # f32 sublane count


def _round_up(x, m):
    return (x + m - 1) // m * m


def _pos_embed_ln_kernel(pos_ref, x_ref, table_ref, gamma_ref, beta_ref, o_ref,
                         *, eps: float, inv_d: float):
    """One grid step == TM tokens.

    pos_ref   : (TM, 1)   int32  clamped per-token position id
    x_ref     : (TM, Dp)  x-dty  input tile (hidden zero-padded to lane multiple)
    table_ref : (Pp, Dp)  f32    position-embedding table (grid-invariant)
    gamma_ref : (1,  Dp)  f32    LayerNorm weight (zero-padded)
    beta_ref  : (1,  Dp)  f32    LayerNorm bias   (zero-padded)
    o_ref     : (TM, Dp)  x-dty  output tile
    """
    tm = x_ref.shape[0]
    p_pad = table_ref.shape[0]

    # Embedding gather as one-hot matmul on the MXU.  For small tables this is
    # strictly cheaper than a per-token DMA gather; the (TM, Pp) one-hot is a
    # couple of VPU passes.
    pos = pos_ref[...]                                            # (TM, 1) int32
    iota_p = lax.broadcasted_iota(jnp.int32, (tm, p_pad), 1)      # (TM, Pp)
    onehot = (pos == iota_p).astype(table_ref.dtype)              # (TM, Pp)
    pe = jnp.dot(onehot, table_ref[...],
                 preferred_element_type=jnp.float32)              # (TM, Dp)

    h = x_ref[...].astype(jnp.float32) + pe                       # residual add

    # One-pass LayerNorm stats.  Padded hidden lanes of `h` are exactly zero
    # (inputs / table / gamma / beta are zero-padded), so full-width sums equal
    # the true-D sums and no lane mask is needed.  inv_d = 1 / true_D.
    s1 = jnp.sum(h, axis=-1, keepdims=True)
    s2 = jnp.sum(h * h, axis=-1, keepdims=True)
    mean = s1 * inv_d
    var = jnp.maximum(s2 * inv_d - mean * mean, 0.0)   # clamp: one-pass formula
    normed = (h - mean) * lax.rsqrt(var + eps)         # rsqrt -> EUP slot
    out = normed * gamma_ref[...] + beta_ref[...]      # padded lanes -> 0

    # Dropout == identity (eval mode).
    o_ref[...] = out.astype(o_ref.dtype)


def position_embedding_forward(input_tensor, seq_lengths, shift_step,
                               pe_table, ln_gamma, ln_beta,
                               *, eps: float = 1e-12, tm: int = 1024):
    """JAX wrapper reproducing PositionEmbedding.forward (eval mode)."""
    L1, D = input_tensor.shape
    P, _ = pe_table.shape
    x_dtype = input_tensor.dtype

    # ---- glue: per-token position ids (same math as the PyTorch module) ----
    seq_lengths = seq_lengths.astype(jnp.int32)
    csum = jnp.cumsum(seq_lengths)                      # inclusive cumsum [B]
    starts = jnp.roll(csum, 1).at[0].set(0)             # exclusive cumsum [B]
    tok = jnp.arange(L1, dtype=jnp.int32)
    seg_id = jnp.searchsorted(csum, tok, side="right")  # segment of each token
    position_ids = tok - starts[seg_id] + jnp.int32(shift_step)
    # nn.Embedding would raise on out-of-range ids; clamp instead of letting
    # the one-hot silently produce a zero embedding.
    position_ids = jnp.clip(position_ids, 0, P - 1).astype(jnp.int32)

    # ---- lane-dense padding targets ----
    d_pad = _round_up(D, _LANE)
    p_pad = _round_up(P, _LANE)

    # ---- token tile: largest that fits the explicit VMEM budget ----
    tm_eff = max(_SUBLANE, _round_up(min(tm, L1), _SUBLANE))
    itemsize = jnp.dtype(x_dtype).itemsize

    def vmem_estimate(t):
        io = 2 * t * d_pad * itemsize * 2                 # x + out double buffers
        pos = 2 * t * _LANE * 4                           # (t,1) int32 block, lane-padded
        resident = 2 * (p_pad * d_pad + 2 * d_pad) * 4    # table + gamma + beta (dbl-buffered)
        temps = t * p_pad * 4 + 4 * t * d_pad * 4         # one-hot + f32 temporaries
        return io + pos + resident + temps

    budget = 48 * 1024 * 1024        # headroom below v7x's 64 MiB physical VMEM
    while tm_eff > _SUBLANE and vmem_estimate(tm_eff) > budget:
        tm_eff = max(_SUBLANE, _round_up(tm_eff // 2, _SUBLANE))

    L1_pad = _round_up(L1, tm_eff)
    grid = (L1_pad // tm_eff,)

    # ---- zero-pad operands (jnp.pad with zero widths is elided by XLA) ----
    x_p = jnp.pad(input_tensor, ((0, L1_pad - L1), (0, d_pad - D)))
    table_p = jnp.pad(pe_table.astype(jnp.float32),
                      ((0, p_pad - P), (0, d_pad - D)))
    gamma_p = jnp.pad(ln_gamma.reshape(1, D).astype(jnp.float32),
                      ((0, 0), (0, d_pad - D)))
    beta_p = jnp.pad(ln_beta.reshape(1, D).astype(jnp.float32),
                     ((0, 0), (0, d_pad - D)))
    pos_p = jnp.pad(position_ids, (0, L1_pad - L1)).reshape(L1_pad, 1)

    kernel = functools.partial(_pos_embed_ln_kernel, eps=eps, inv_d=1.0 / D)

    vmem_limit = int(min(64 * 1024 * 1024,
                         max(16 * 1024 * 1024,
                             vmem_estimate(tm_eff) + (4 << 20))))

    out_p = pl.pallas_call(
        kernel,
        out_shape=jax.ShapeDtypeStruct((L1_pad, d_pad), x_dtype),
        grid_spec=pltpu.PrefetchScalarGridSpec(
            num_scalar_prefetch=0,
            grid=grid,
            in_specs=[
                pl.BlockSpec((tm_eff, 1), lambda i: (i, 0)),       # position ids
                pl.BlockSpec((tm_eff, d_pad), lambda i: (i, 0)),   # input tokens
                # Grid-invariant operands: block index never changes -> DMA'd once.
                pl.BlockSpec((p_pad, d_pad), lambda i: (0, 0)),    # PE table
                pl.BlockSpec((1, d_pad), lambda i: (0, 0)),        # LN gamma
                pl.BlockSpec((1, d_pad), lambda i: (0, 0)),        # LN beta
            ],
            out_specs=pl.BlockSpec((tm_eff, d_pad), lambda i: (i, 0)),
        ),
        compiler_params=pltpu.CompilerParams(
            dimension_semantics=("parallel",),     # megacore-shard the token axis
            vmem_limit_bytes=vmem_limit),
    )(pos_p, x_p, table_p, gamma_p, beta_p)

    return out_p[:L1, :D]


def _reference(input_tensor, seq_lengths, shift_step, pe_table, ln_gamma, ln_beta, eps):
    L1, _ = input_tensor.shape
    csum = jnp.cumsum(seq_lengths.astype(jnp.int32))
    starts = jnp.roll(csum, 1).at[0].set(0)
    tok = jnp.arange(L1, dtype=jnp.int32)
    seg_id = jnp.searchsorted(csum, tok, side="right")
    pos_ids = tok - starts[seg_id] + jnp.int32(shift_step)
    h = input_tensor + pe_table[pos_ids]
    mean = jnp.mean(h, axis=-1, keepdims=True)
    var = jnp.mean((h - mean) ** 2, axis=-1, keepdims=True)
    return (h - mean) / jnp.sqrt(var + eps) * ln_gamma + ln_beta


if __name__ == "__main__":
    # config: hidden_size=32, max_position_embeddeings=32, layer_norm_eps=1e-12
    D = 32          # hidden_size
    P = 32          # max_position_embeddeings
    EPS = 1e-12
    seq_lengths = jnp.array([10, 6], dtype=jnp.int32)   # L1 = 16
    L1 = int(jnp.sum(seq_lengths))
    shift_step = 2

    key = jax.random.PRNGKey(0)
    k_x, k_emb = jax.random.split(key)
    x = jax.random.normal(k_x, (L1, D), dtype=jnp.float32)
    pe_table = jax.random.normal(k_emb, (P, D), dtype=jnp.float32)  # nn.Embedding ~ N(0,1)
    ln_gamma = jnp.ones((1, D), dtype=jnp.float32)                  # LayerNorm defaults
    ln_beta = jnp.zeros((1, D), dtype=jnp.float32)

    out = position_embedding_forward(x, seq_lengths, shift_step,
                                     pe_table, ln_gamma, ln_beta, eps=EPS, tm=1024)
    out = jax.block_until_ready(out)

    ref = _reference(x, seq_lengths, shift_step, pe_table, ln_gamma, ln_beta, EPS)
    assert out.shape == ref.shape, "shape mismatch vs reference"
    assert jnp.allclose(out, ref, atol=1e-4, rtol=1e-4), "mismatch vs reference"

    print("KERNEL_OK")
</pallas_src>

<mosaic_0001>
module attributes {stable_mosaic.version = 11 : i64} {
  func.func @_pos_embed_ln_kernel(%arg0: i32, %arg1: memref<16x1xi32, #tpu.memory_space<vmem>>, %arg2: memref<16x128xf32, #tpu.memory_space<vmem>>, %arg3: memref<128x128xf32, #tpu.memory_space<vmem>>, %arg4: memref<1x128xf32, #tpu.memory_space<vmem>>, %arg5: memref<1x128xf32, #tpu.memory_space<vmem>>, %arg6: memref<16x128xf32, #tpu.memory_space<vmem>>) attributes {dimension_semantics = [#tpu.dimension_semantics<parallel>], iteration_bounds = array<i64: 1>, scalar_prefetch = 0 : i64, scratch_operands = 0 : i64, tpu.core_type = #tpu.core_type<tc>, window_params = [{transform_indices = @transform_0, window_bounds = array<i64: 16, 1>}, {transform_indices = @transform_1, window_bounds = array<i64: 16, 128>}, {pipeline_mode = #tpu.pipeline_mode<synchronous>, transform_indices = @transform_2, window_bounds = array<i64: 128, 128>}, {pipeline_mode = #tpu.pipeline_mode<synchronous>, transform_indices = @transform_3, window_bounds = array<i64: 1, 128>}, {pipeline_mode = #tpu.pipeline_mode<synchronous>, transform_indices = @transform_4, window_bounds = array<i64: 1, 128>}, {transform_indices = @transform_5, window_bounds = array<i64: 16, 128>}]} {
    %c0 = arith.constant 0 : index
    %c0_0 = arith.constant 0 : index
    %0 = vector.load %arg1[%c0, %c0_0] : memref<16x1xi32, #tpu.memory_space<vmem>>, vector<16x1xi32>
    %1 = tpu.iota {dimensions = array<i32: 1>} : vector<16x128xi32>
    %2 = vector.broadcast %0 : vector<16x1xi32> to vector<16x128xi32>
    %3 = arith.cmpi eq, %2, %1 : vector<16x128xi32>
    %4 = arith.extui %3 : vector<16x128xi1> to vector<16x128xi32>
    %5 = arith.sitofp %4 : vector<16x128xi32> to vector<16x128xf32>
    %c0_1 = arith.constant 0 : index
    %c0_2 = arith.constant 0 : index
    %6 = vector.load %arg3[%c0_1, %c0_2] : memref<128x128xf32, #tpu.memory_space<vmem>>, vector<128x128xf32>
    %cst = arith.constant dense<0.000000e+00> : vector<16x128xf32>
    %7 = tpu.matmul %5, %6, %cst {dimension_numbers = #tpu.dot_dimension_numbers<[1], [0], [0], [1], [0, 0, 1, 1], [], []>} : vector<16x128xf32>, vector<128x128xf32>, vector<16x128xf32> -> vector<16x128xf32>
    %c0_3 = arith.constant 0 : index
    %c0_4 = arith.constant 0 : index
    %8 = vector.load %arg2[%c0_3, %c0_4] : memref<16x128xf32, #tpu.memory_space<vmem>>, vector<16x128xf32>
    %9 = arith.addf %8, %7 : vector<16x128xf32>
    %cst_5 = arith.constant dense<0.000000e+00> : vector<16xf32>
    %10 = vector.multi_reduction <add>, %9, %cst_5 [1] : vector<16x128xf32> to vector<16xf32>
    %11 = vector.shape_cast %10 : vector<16xf32> to vector<16x1xf32>
    %12 = arith.mulf %9, %9 : vector<16x128xf32>
    %cst_6 = arith.constant dense<0.000000e+00> : vector<16xf32>
    %13 = vector.multi_reduction <add>, %12, %cst_6 [1] : vector<16x128xf32> to vector<16xf32>
    %14 = vector.shape_cast %13 : vector<16xf32> to vector<16x1xf32>
    %cst_7 = arith.constant 3.125000e-02 : f32
    %15 = vector.broadcast %cst_7 : f32 to vector<16x1xf32>
    %16 = arith.mulf %11, %15 : vector<16x1xf32>
    %cst_8 = arith.constant 3.125000e-02 : f32
    %17 = vector.broadcast %cst_8 : f32 to vector<16x1xf32>
    %18 = arith.mulf %14, %17 : vector<16x1xf32>
    %19 = arith.mulf %16, %16 : vector<16x1xf32>
    %20 = arith.subf %18, %19 : vector<16x1xf32>
    %cst_9 = arith.constant 0.000000e+00 : f32
    %21 = vector.broadcast %cst_9 : f32 to vector<16x1xf32>
    %22 = arith.maximumf %20, %21 : vector<16x1xf32>
    %23 = vector.broadcast %16 : vector<16x1xf32> to vector<16x128xf32>
    %24 = arith.subf %9, %23 : vector<16x128xf32>
    %cst_10 = arith.constant 9.99999996E-13 : f32
    %25 = vector.broadcast %cst_10 : f32 to vector<16x1xf32>
    %26 = arith.addf %22, %25 : vector<16x1xf32>
    %27 = math.rsqrt %26 : vector<16x1xf32>
    %28 = vector.broadcast %27 : vector<16x1xf32> to vector<16x128xf32>
    %29 = arith.mulf %24, %28 : vector<16x128xf32>
    %c0_11 = arith.constant 0 : index
    %c0_12 = arith.constant 0 : index
    %30 = vector.load %arg4[%c0_11, %c0_12] : memref<1x128xf32, #tpu.memory_space<vmem>>, vector<1x128xf32>
    %31 = vector.broadcast %30 : vector<1x128xf32> to vector<16x128xf32>
    %32 = arith.mulf %29, %31 : vector<16x128xf32>
    %c0_13 = arith.constant 0 : index
    %c0_14 = arith.constant 0 : index
    %33 = vector.load %arg5[%c0_13, %c0_14] : memref<1x128xf32, #tpu.memory_space<vmem>>, vector<1x128xf32>
    %34 = vector.broadcast %33 : vector<1x128xf32> to vector<16x128xf32>
    %35 = arith.addf %32, %34 : vector<16x128xf32>
    %c0_15 = arith.constant 0 : index
    %c0_16 = arith.constant 0 : index
    %36 = vector.load %arg6[%c0_15, %c0_16] : memref<16x128xf32, #tpu.memory_space<vmem>>, vector<16x128xf32>
    tpu.vector_store %arg6[%c0_15, %c0_16], %35 {strides = array<i32>} : memref<16x128xf32, #tpu.memory_space<vmem>>, vector<16x128xf32>,
    return
  }
  func.func @transform_0(%arg0: i32) -> (i32, i32) {
    %c0_i32 = arith.constant 0 : i32
    %c0_i32_0 = arith.constant 0 : i32
    return %arg0, %c0_i32 : i32, i32
  }
  func.func @transform_1(%arg0: i32) -> (i32, i32) {
    %c0_i32 = arith.constant 0 : i32
    %c0_i32_0 = arith.constant 0 : i32
    return %arg0, %c0_i32 : i32, i32
  }
  func.func @transform_2(%arg0: i32) -> (i32, i32) {
    %c0_i32 = arith.constant 0 : i32
    %c0_i32_0 = arith.constant 0 : i32
    %c0_i32_1 = arith.constant 0 : i32
    return %c0_i32, %c0_i32_0 : i32, i32
  }
  func.func @transform_3(%arg0: i32) -> (i32, i32) {
    %c0_i32 = arith.constant 0 : i32
    %c0_i32_0 = arith.constant 0 : i32
    %c0_i32_1 = arith.constant 0 : i32
    return %c0_i32, %c0_i32_0 : i32, i32
  }
  func.func @transform_4(%arg0: i32) -> (i32, i32) {
    %c0_i32 = arith.constant 0 : i32
    %c0_i32_0 = arith.constant 0 : i32
    %c0_i32_1 = arith.constant 0 : i32
    return %c0_i32, %c0_i32_0 : i32, i32
  }
  func.func @transform_5(%arg0: i32) -> (i32, i32) {
    %c0_i32 = arith.constant 0 : i32
    %c0_i32_0 = arith.constant 0 : i32
    return %arg0, %c0_i32 : i32, i32
  }
}

</mosaic_0001>

<llo_original>
// kernel: tpu_custom_call.1
$region0: #{tpu_custom_call.1}
  #allocation0 [shape = 'u32[]', space=smem, size = 0x4, offset = 0x4, fixed_abs, tag = 'smem constant byte address 0x4 - core index']
  #allocation1 [shape = 'u32[144,128]{1,0:T(1,128)}', space=vmem, size = 0x12000, scoped, tag = 'internal scratch']
  %s0 = inlined_call_operand.vmem [shape: s32[16,1], index: 0, kind: input, shape index: {}]
  %s1 = inlined_call_operand.vmem [shape: f32[16,128], index: 1, kind: input, shape index: {}]
  %s2 = inlined_call_operand.hbm [shape: f32[128,128], index: 2, kind: input, shape index: {}]
  %s3 = inlined_call_operand.vmem [shape: f32[1,128], index: 3, kind: input, shape index: {}]
  %s4 = inlined_call_operand.vmem [shape: f32[1,128], index: 4, kind: input, shape index: {}]
  %s5 = inlined_call_operand.hbm [shape: f32[16,128], index: 5, kind: output, shape index: {}]
  %s6 = sld [smem:[#allocation0]]
  $region34: #{tpu_custom_call.1} parent=0
    _
  %s8 = ssub.s32 1, %s6
  %s9 = scalar_select 0, %s8, %s6
  $region1: #{tpu_custom_call.1} parent=0
    #allocation2 [shape = 'u8[65536]{0}', space=vmem, size = 0x10000, scoped, tag = 'input window, operand 2, single buffered']
    #allocation3 [shape = 's32[1]{0}', space=sflag, size = 0x4, scoped, tag = 'scoped memory for tpu_custom_call.1']
    #allocation4 [shape = 's32[1]{0}', space=sflag, size = 0x4, scoped, tag = 'scoped memory for tpu_custom_call.1']
    #allocation5 [shape = 'u8[8192]{0}', space=vmem, size = 0x2000, scoped, tag = 'output window, operand 0, single buffered']
    %10 = vsyncpa [#allocation3], 0
    %11 = vsyncpa [#allocation4], 0
    // Predicated region
    $region2: #{tpu_custom_call.1} parent=1 // pred_check
      _
    $region3: #{tpu_custom_call.1} parent=1 // pred_check_branch
      %13 = sbr.rel (0) target = $region5
    $region4: #{tpu_custom_call.1} parent=1 // pred_region
      _
    $region5: #{tpu_custom_call.1} parent=1 // pred_fallthru
      _
    // Predicated region
    $region6: #{tpu_custom_call.1} parent=1 // pred_check
      _
    $region7: #{tpu_custom_call.1} parent=1 // pred_check_branch
      %15 = sbr.rel (0) target = $region9
    $region8: #{tpu_custom_call.1} parent=1 // pred_region
      _
    $region9: #{tpu_custom_call.1} parent=1 // pred_fallthru
      _
    // Predicated region
    $region10: #{tpu_custom_call.1} parent=1 // pred_check
      _
    $region11: #{tpu_custom_call.1} parent=1 // pred_check_branch
      %17 = sbr.rel (0) target = $region13
    $region12: #{tpu_custom_call.1} parent=1 // pred_region
      %s19 = ssub.s32 2048, 2048
      %20 = vsyncadd [#allocation3], %s19
      %s21 = sshll.u32 [#allocation2], 4
      %s22 = int_to_ptr.vmem [resolvable:$true] %s21
      %27 = dma.hbm_to_vmem [thread:$0]  %s2, 2048, %s22, [#allocation3], 128, 128, 8
    $region13: #{tpu_custom_call.1} parent=1 // pred_fallthru
      _
    // Predicated region
    $region14: #{tpu_custom_call.1} parent=1 // pred_check
      _
    $region15: #{tpu_custom_call.1} parent=1 // pred_check_branch
      %29 = sbr.rel (0) target = $region17
    $region16: #{tpu_custom_call.1} parent=1 // pred_region
      _
    $region17: #{tpu_custom_call.1} parent=1 // pred_fallthru
      _
    // Predicated region
    $region18: #{tpu_custom_call.1} parent=1 // pred_check
      _
    $region19: #{tpu_custom_call.1} parent=1 // pred_check_branch
      %31 = sbr.rel (0) target = $region21
    $region20: #{tpu_custom_call.1} parent=1 // pred_region
      _
    $region21: #{tpu_custom_call.1} parent=1 // pred_fallthru
      _
    // Predicated region
    $region22: #{tpu_custom_call.1} parent=1 // pred_check
      _
    $region23: #{tpu_custom_call.1} parent=1 // pred_check_branch
      %33 = sbr.rel (0) target = $region25
    $region24: #{tpu_custom_call.1} parent=1 // pred_region
      %34 = dma.done [#allocation3], 2048
    $region25: #{tpu_custom_call.1} parent=1 // pred_fallthru
      _
    %v35 = vld [vmem:[%s0] sm:$0xff]
    %v36 = vld [vmem:[%s0 + $0x8] sm:$0xff]
    %v37 = vlaneseq
    %v38 = vand.u32 %v37, 127
    %39 = vset.pattern.permute.xlu0 0
    %40 = vperm.xlu0 %39, %v35
    %v41 = vpop.permute.xlu0 %40
    %42 = vset.pattern.permute.xlu0 0
    %43 = vperm.xlu0 %42, %v36
    %v44 = vpop.permute.xlu0 %43
    %vm45 = vcmp.eq.s32.totalorder %v41, %v38
    %vm46 = vcmp.eq.s32.totalorder %v44, %v38
    %v47 = vsel %vm45, 1, 0
    %v48 = vsel %vm46, 1, 0
    %v49 = vcvt.s32.f32 %v47
    %v50 = vcvt.s32.f32 %v48
    %v51 = vld [vmem:[#allocation2] sm:$0xff]
    %v52 = vld [vmem:[#allocation2 + $0x8] sm:$0xff]
    %v53 = vld [vmem:[#allocation2 + $0x10] sm:$0xff]
    %v54 = vld [vmem:[#allocation2 + $0x18] sm:$0xff]
    %v55 = vld [vmem:[#allocation2 + $0x20] sm:$0xff]
    %v56 = vld [vmem:[#allocation2 + $0x28] sm:$0xff]
    %v57 = vld [vmem:[#allocation2 + $0x30] sm:$0xff]
    %v58 = vld [vmem:[#allocation2 + $0x38] sm:$0xff]
    %v59 = vld [vmem:[#allocation2 + $0x40] sm:$0xff]
    %v60 = vld [vmem:[#allocation2 + $0x48] sm:$0xff]
    %v61 = vld [vmem:[#allocation2 + $0x50] sm:$0xff]
    %v62 = vld [vmem:[#allocation2 + $0x58] sm:$0xff]
    %v63 = vld [vmem:[#allocation2 + $0x60] sm:$0xff]
    %v64 = vld [vmem:[#allocation2 + $0x68] sm:$0xff]
    %v65 = vld [vmem:[#allocation2 + $0x70] sm:$0xff]
    %v66 = vld [vmem:[#allocation2 + $0x78] sm:$0xff]
    %67 = vmatprep.subr.mxu0 0.0
    %68 = vmatpush1.msra.mxu0 %v66
    %69 = vmatprep.subr.mxu0 0.0
    %70 = vmatpush1.msra.mxu0 %v65
    %71 = vmatprep.subr.mxu0 0.0
    %72 = vmatpush1.msra.mxu0 %v64
    %73 = vmatprep.subr.mxu0 0.0
    %74 = vmatpush1.msra.mxu0 %v63
    %75 = vmatprep.subr.mxu0 0.0
    %76 = vmatpush1.msra.mxu0 %v62
    %77 = vmatprep.subr.mxu0 0.0
    %78 = vmatpush1.msra.mxu0 %v61
    %79 = vmatprep.subr.mxu0 0.0
    %80 = vmatpush1.msra.mxu0 %v60
    %81 = vmatprep.subr.mxu0 0.0
    %82 = vmatpush1.msra.mxu0 %v59
    %83 = vmatprep.subr.mxu0 0.0
    %84 = vmatpush1.msra.mxu0 %v58
    %85 = vmatprep.subr.mxu0 0.0
    %86 = vmatpush1.msra.mxu0 %v57
    %87 = vmatprep.subr.mxu0 0.0
    %88 = vmatpush1.msra.mxu0 %v56
    %89 = vmatprep.subr.mxu0 0.0
    %90 = vmatpush1.msra.mxu0 %v55
    %91 = vmatprep.subr.mxu0 0.0
    %92 = vmatpush1.msra.mxu0 %v54
    %93 = vmatprep.subr.mxu0 0.0
    %94 = vmatpush1.msra.mxu0 %v53
    %95 = vmatprep.subr.mxu0 0.0
    %96 = vmatpush1.msra.mxu0 %v52
    %97 = vmatprep.subr.mxu0 0.0
    %98 = vmatpush1.msra.mxu0 %v51
    %99 = vmatprep.subr.mxu0 0.0
    %100 = vmatpush2.msra.mxu0 0.0
    %101 = vmatprep.subr.mxu0 0.0
    %102 = vmatpush2.msra.mxu0 0.0
    %103 = vmatprep.subr.mxu0 0.0
    %104 = vmatpush2.msra.mxu0 0.0
    %105 = vmatprep.subr.mxu0 0.0
    %106 = vmatpush2.msra.mxu0 0.0
    %107 = vmatprep.subr.mxu0 0.0
    %108 = vmatpush2.msra.mxu0 0.0
    %109 = vmatprep.subr.mxu0 0.0
    %110 = vmatpush2.msra.mxu0 0.0
    %111 = vmatprep.subr.mxu0 0.0
    %112 = vmatpush2.msra.mxu0 0.0
    %113 = vmatprep.subr.mxu0 0.0
    %114 = vmatpush2.msra.mxu0 0.0
    %115 = vmatprep.subr.mxu0 0.0
    %116 = vmatpush2.msra.mxu0 0.0
    %117 = vmatprep.subr.mxu0 0.0
    %118 = vmatpush2.msra.mxu0 0.0
    %119 = vmatprep.subr.mxu0 0.0
    %120 = vmatpush2.msra.mxu0 0.0
    %121 = vmatprep.subr.mxu0 0.0
    %122 = vmatpush2.msra.mxu0 0.0
    %123 = vmatprep.subr.mxu0 0.0
    %124 = vmatpush2.msra.mxu0 0.0
    %125 = vmatprep.subr.mxu0 0.0
    %126 = vmatpush2.msra.mxu0 0.0
    %127 = vmatprep.subr.mxu0 0.0
    %128 = vmatpush2.msra.mxu0 0.0
    %129 = vmatprep.subr.mxu0 0.0
    %130 = vmatpush2.msra.mxu0 0.0
    %131 = vmatprep.mubr.f32.mxu0 0.0
    %132 = vmatmul.mubr.f32.gmra.mxu0 %v49
    %v133 = vpop.f32.mrf.mxu0
    %v134 = vadd.f32 0.0, %v133
    %v135 = vpop.f32.mrf.mxu0
    %136 = vmatprep.mubr.f32.mxu0 0.0
    %137 = vmatmul.mubr.f32.gmra.mxu0 %v50
    %v138 = vpop.f32.mrf.mxu0
    %v139 = vadd.f32 0.0, %v138
    %v140 = vpop.f32.mrf.mxu0
    %141 = vdwg.mxu0
    %v142 = vld [vmem:[%s1] sm:$0xff]
    %v143 = vld [vmem:[%s1 + $0x8] sm:$0xff]
    %v144 = vadd.f32 %v142, %v134
    %v145 = vadd.f32 %v143, %v139
    %146 = vadd.xlane.f32.xlu0 %v144
    %v147 = vpop.xlane.xlu0 %146
    %148 = vadd.xlane.f32.xlu0 %v145
    %v149 = vpop.xlane.xlu0 %148
    %v150 = vmul.f32 %v144, %v144
    %v151 = vmul.f32 %v145, %v145
    %152 = vadd.xlane.f32.xlu0 %v150
    %v153 = vpop.xlane.xlu0 %152
    %154 = vadd.xlane.f32.xlu0 %v151
    %v155 = vpop.xlane.xlu0 %154
    %v156 = vmul.f32 %v147, 0.03125
    %v157 = vmul.f32 %v149, 0.03125
    %v158 = vmul.f32 %v153, 0.03125
    %v159 = vmul.f32 %v155, 0.03125
    %v160 = vmul.f32 %v156, %v156
    %v161 = vmul.f32 %v157, %v157
    %v162 = vsub.f32 %v158, %v160
    %v163 = vsub.f32 %v159, %v161
    %v164 = vmax.f32 %v162, 0.0
    %v165 = vmax.f32 %v163, 0.0
    %v166 = vsub.f32 %v144, %v156
    %v167 = vsub.f32 %v145, %v157
    %v168 = vadd.f32 %v164, 1e-12
    %v169 = vadd.f32 %v165, 1e-12
    %v170 = vrsqrt.pop %v168
    %v171 = vrsqrt.pop %v169
    %v172 = vmul.f32 %v166, %v170
    %v173 = vmul.f32 %v167, %v171
    %v174 = vld [vmem:[%s3] sm:$0x1]
    %v176 = vlaneseq
    %v177 = vshrl.u32 %v176, 7
    %v178 = vsub.s32 0, %v177
    %v179 = vrot.slane %v174, %v178
    %v181 = vmul.f32 %v172, %v179
    %v182 = vmul.f32 %v173, %v179
    %v183 = vld [vmem:[%s4] sm:$0x1]
    %v185 = vlaneseq
    %v186 = vshrl.u32 %v185, 7
    %v187 = vsub.s32 0, %v186
    %v188 = vrot.slane %v183, %v187
    %v190 = vadd.f32 %v181, %v188
    %v191 = vadd.f32 %v182, %v188
    %192 = vst [vmem:[#allocation5] sm:$0xff] %v190
    %193 = vst [vmem:[#allocation5 + $0x8] sm:$0xff] %v191
    // Predicated region
    $region26: #{tpu_custom_call.1} parent=1 // pred_check
      _
    $region27: #{tpu_custom_call.1} parent=1 // pred_check_branch
      %195 = sbr.rel (0) target = $region29
    $region28: #{tpu_custom_call.1} parent=1 // pred_region
      %s197 = ssub.s32 256, 256
      %198 = vsyncadd [#allocation4], %s197
      %s199 = sshll.u32 [#allocation5], 4
      %s200 = int_to_ptr.vmem [resolvable:$true] %s199
      %205 = dma.vmem_to_hbm [thread:$0]  %s200, 256, %s5, [#allocation4], 128, 128, 8
    $region29: #{tpu_custom_call.1} parent=1 // pred_fallthru
      _
    // Predicated region
    $region30: #{tpu_custom_call.1} parent=1 // pred_check
      _
    $region31: #{tpu_custom_call.1} parent=1 // pred_check_branch
      %207 = sbr.rel (0) target = $region33
    $region32: #{tpu_custom_call.1} parent=1 // pred_region
      %208 = dma.done [#allocation4], 256
    $region33: #{tpu_custom_call.1} parent=1 // pred_fallthru
      _
    %209 = vsyncpa [#allocation3], 1
    %210 = vsyncpa [#allocation4], 1

</llo_original>
